<compile_context>
chip_gen: v5e
topology: v5e:2x2
jax: 0.10.0
libtpu: 0.0.40
codegen_flags: <defaults>
</compile_context>

<pallas_src>
import functools
import math

import jax
import jax.numpy as jnp
import numpy as np
from jax.experimental import pallas as pl
from jax.experimental.pallas import tpu as pltpu


# --------------------------------------------------------------------------- #
# Kernel                                                                      #
# --------------------------------------------------------------------------- #
def _dense_attention_kernel(x_ref, wq_ref, bq_ref, a_ref, bias_ref, out_ref, *,
                            hb):
    # x_ref   : (1, TQ, D)   query-row tile of src for this batch element
    # wq_ref  : (Hb, D, K)   per-head slices of q_linear weight (pre-transposed)
    # bq_ref  : (Hb, 1, K)   per-head slices of q_linear bias (f32)
    # a_ref   : (Hb, K, S)   per-head slices of atten_linear[:, :S]
    # bias_ref: (Hb, 1, S)   per-head rows of atten_bias[:, :S] (f32)
    # out_ref : (1, Hb, TQ, S)
    x = x_ref[0]                                                  # (TQ, D)
    for h in range(hb):                     # static unroll over merged heads
        # Per-head q projection on the MXU, f32 accumulation.
        q = jnp.dot(x, wq_ref[h], preferred_element_type=jnp.float32)  # (TQ,K)
        q = jnp.maximum(q + bq_ref[h], 0.0)                       # bias + relu
        # Per-head attention map: (TQ, K) @ (K, S), f32 accumulation.
        w = jnp.dot(q.astype(a_ref.dtype), a_ref[h],
                    preferred_element_type=jnp.float32)           # (TQ, S)
        out_ref[0, h] = (w + bias_ref[h]).astype(out_ref.dtype)


# --------------------------------------------------------------------------- #
# Tile-size / VMEM heuristics                                                 #
# --------------------------------------------------------------------------- #
def _round_up(x, m):
    return -(-x // m) * m


def _padded_block_bytes(shape, dtype):
    """VMEM bytes of one block after (sublane, lane) tile padding."""
    itemsize = jnp.dtype(dtype).itemsize
    dims = list(shape)
    if len(dims) >= 1:
        dims[-1] = _round_up(dims[-1], 128)
    if len(dims) >= 2:
        sub = max(8, 32 // itemsize)
        dims[-2] = _round_up(dims[-2], sub)
    return int(math.prod(dims)) * itemsize


def _vmem_capacity_bytes():
    try:
        return int(pltpu.get_tpu_info().vmem_capacity_bytes)
    except Exception:
        return 128 << 20      # v5e/v6e physical VMEM; conservative fallback


def _footprint_bytes(tq, hb, S, D, K, in_dtype, out_dtype):
    blocks = [
        ((tq, D), in_dtype),          # x tile
        ((hb, D, K), in_dtype),       # Wq slab
        ((hb, 1, K), jnp.float32),    # bq
        ((hb, K, S), in_dtype),       # A slab
        ((hb, 1, S), jnp.float32),    # atten_bias
        ((hb, tq, S), out_dtype),     # output block
    ]
    # Each BlockSpec-managed buffer is double-buffered by the pipeline; the
    # factor of 2 is applied exactly once here (not again at the limit).
    return 2 * sum(_padded_block_bytes(s, d) for s, d in blocks)


def _divisors_desc(n):
    return [d for d in range(n, 0, -1) if n % d == 0]


def _choose_tiles(S, H, D, K, in_dtype, out_dtype, budget, tq_target):
    """Pick (TQ, Hb) so the double-buffered block set fits the VMEM budget.

    Never falls back to TQ = S: the wrapper pads the query-row axis to a
    multiple of TQ instead, so VMEM stays bounded for any S.
    """
    out_itemsize = jnp.dtype(out_dtype).itemsize
    tq = min(tq_target, _round_up(S, 8))
    while True:
        for hb in _divisors_desc(H):
            # Head-merging is a small-S optimization (lengthens the per-step
            # writeback DMA); stop merging once the output block is ~4 MiB.
            if hb > 1 and hb * tq * S * out_itemsize > (4 << 20):
                continue
            fp = _footprint_bytes(tq, hb, S, D, K, in_dtype, out_dtype)
            if fp <= budget:
                return tq, hb, fp
        if tq <= 8:
            return 8, 1, _footprint_bytes(8, 1, S, D, K, in_dtype, out_dtype)
        tq = max(8, _round_up(tq // 2, 8))


# --------------------------------------------------------------------------- #
# Wrapper                                                                     #
# --------------------------------------------------------------------------- #
def dense_attention(src, wq_t, bq, atten_linear, atten_bias, head, *,
                    compute_dtype=jnp.bfloat16, out_dtype=jnp.float32):
    """src: [B, S, D] -> out: [B, H, S, S] in `out_dtype`.

    compute_dtype: dtype of the MXU operands (src, Wq, A); default bf16.
                   Accumulation and biases stay f32.
    out_dtype:     output dtype; bf16 halves the dominant writeback traffic.
    """
    B, S, D = src.shape
    H = head
    assert D % H == 0
    K = D // H

    compute_dtype = jnp.dtype(compute_dtype if compute_dtype is not None
                              else src.dtype)
    out_dtype = jnp.dtype(out_dtype)

    # Per-generation sizing: v7x has 64 MiB VMEM per TensorCore -> smaller
    # target tiles + ~80% cap; v5e/v6e have 128 MiB -> let tiles grow to 512.
    vmem_cap = _vmem_capacity_bytes()
    budget = min(int(vmem_cap * 0.8), 112 << 20)
    tq_target = 256 if vmem_cap <= (64 << 20) else 512

    TQ, Hb, footprint = _choose_tiles(S, H, D, K, compute_dtype, out_dtype,
                                      budget, tq_target)

    # Pad query rows so the grid tiles them exactly; pad rows are sliced off.
    S_pad = _round_up(S, TQ)
    x = src.astype(compute_dtype)
    if S_pad != S:
        x = jnp.pad(x, ((0, 0), (0, S_pad - S), (0, 0)))

    # Parameter glue stays in plain XLA: per-head layouts so the kernel never
    # slices lanes or relayouts.
    wq_h = jnp.transpose(wq_t.reshape(D, H, K), (1, 0, 2)).astype(compute_dtype)  # (H,D,K)
    bq_h = bq.reshape(H, 1, K).astype(jnp.float32)                                # (H,1,K)
    a_h = atten_linear[:, :S].reshape(H, K, S).astype(compute_dtype)              # (H,K,S)
    bias_h = atten_bias[:, :S].reshape(H, 1, S).astype(jnp.float32)               # (H,1,S)

    n_hg = H // Hb
    n_qt = S_pad // TQ

    in_itemsize = compute_dtype.itemsize
    out_itemsize = out_dtype.itemsize
    bytes_accessed = int(
        n_hg * B * S_pad * D * in_itemsize            # x re-read per head group
        + wq_h.size * in_itemsize + a_h.size * in_itemsize
        + bq_h.size * 4 + bias_h.size * 4
        + B * H * S_pad * S * out_itemsize)           # dominant: writeback
    cost = pl.CostEstimate(
        flops=2 * B * S_pad * D * D + 2 * B * H * S_pad * K * S,
        transcendentals=0,
        bytes_accessed=bytes_accessed)

    # Footprint already includes double-buffering; just add headroom and clamp
    # to the per-generation budget.
    vmem_limit = int(min(budget, max(footprint + (4 << 20), 16 << 20)))

    kernel = functools.partial(_dense_attention_kernel, hb=Hb)
    out = pl.pallas_call(
        kernel,
        out_shape=jax.ShapeDtypeStruct((B, H, S_pad, S), out_dtype),
        grid_spec=pltpu.PrefetchScalarGridSpec(
            num_scalar_prefetch=0,
            # Head-group OUTERMOST: Wq/A/bias slabs are DMA'd once total, not
            # once per batch element.  All axes independent -> all parallel.
            grid=(n_hg, B, n_qt),
            in_specs=[
                pl.BlockSpec((1, TQ, D), lambda hg, b, t: (b, t, 0)),
                pl.BlockSpec((Hb, D, K), lambda hg, b, t: (hg, 0, 0)),
                pl.BlockSpec((Hb, 1, K), lambda hg, b, t: (hg, 0, 0)),
                pl.BlockSpec((Hb, K, S), lambda hg, b, t: (hg, 0, 0)),
                pl.BlockSpec((Hb, 1, S), lambda hg, b, t: (hg, 0, 0)),
            ],
            out_specs=pl.BlockSpec((1, Hb, TQ, S),
                                   lambda hg, b, t: (b, hg, t, 0)),
        ),
        compiler_params=pltpu.CompilerParams(
            dimension_semantics=("parallel", "parallel", "parallel"),
            vmem_limit_bytes=vmem_limit,
        ),
        cost_estimate=cost,
    )(x, wq_h, bq_h, a_h, bias_h)

    if S_pad != S:
        out = out[:, :, :S, :]
    return out


def dense_attention_ref(src, wq_t, bq, atten_linear, atten_bias, head):
    """Pure-JAX reference mirroring the PyTorch forward."""
    B, S, D = src.shape
    q = src @ wq_t + bq                                   # (B, S, D)
    query = jax.nn.relu(q.reshape(B, S, head, -1))        # (B, S, H, K)
    a = atten_linear[:, :S].reshape(head, -1, S)          # (H, K, S)
    bias = atten_bias[:, :S]                              # (H, S)
    w = jnp.einsum('bshk,hkl->bshl', query, a) + bias     # (B, S, H, S)
    return jnp.transpose(w, (0, 2, 1, 3))                 # (B, H, S, S)


# --------------------------------------------------------------------------- #
# Self-test                                                                   #
# --------------------------------------------------------------------------- #
if __name__ == "__main__":
    # Small shapes consistent with the module.
    B, S, D, H, MAX_LEN = 2, 8, 32, 4, 16

    key = jax.random.PRNGKey(0)
    k_src, k_w, k_b, k_al, k_ab = jax.random.split(key, 5)

    src = jax.random.normal(k_src, (B, S, D), dtype=jnp.float32)
    # q_linear weight stored pre-transposed so the kernel does x @ Wq.
    wq_t = jax.random.normal(k_w, (D, D), dtype=jnp.float32) * 0.1
    bq = jax.random.normal(k_b, (D,), dtype=jnp.float32) * 0.1
    atten_linear = jax.random.normal(k_al, (D, MAX_LEN), dtype=jnp.float32)
    atten_bias = jax.random.normal(k_ab, (H, MAX_LEN), dtype=jnp.float32)

    ref = dense_attention_ref(src, wq_t, bq, atten_linear, atten_bias, H)

    # f32 operands + f32 output: tight tolerance vs reference.
    out_f32 = jax.block_until_ready(
        dense_attention(src, wq_t, bq, atten_linear, atten_bias, H,
                        compute_dtype=jnp.float32, out_dtype=jnp.float32))
    assert out_f32.shape == (B, H, S, S)
    np.testing.assert_allclose(np.asarray(out_f32), np.asarray(ref),
                               rtol=1e-5, atol=1e-5)

    # Default path: bf16 MXU operands, f32 accumulation, f32 output.
    out_def = jax.block_until_ready(
        dense_attention(src, wq_t, bq, atten_linear, atten_bias, H))
    np.testing.assert_allclose(np.asarray(out_def), np.asarray(ref),
                               rtol=2e-2, atol=5e-2)

    # bf16 writeback: halves the dominant HBM traffic (looser tolerance).
    out_bf16 = jax.block_until_ready(
        dense_attention(src, wq_t, bq, atten_linear, atten_bias, H,
                        out_dtype=jnp.bfloat16))
    assert out_bf16.dtype == jnp.bfloat16
    np.testing.assert_allclose(np.asarray(out_bf16, dtype=np.float32),
                               np.asarray(ref), rtol=3e-2, atol=8e-2)

    print("KERNEL_OK")
</pallas_src>

<mosaic_0001>
module attributes {stable_mosaic.version = 11 : i64} {
  func.func @_dense_attention_kernel(%arg0: i32, %arg1: i32, %arg2: i32, %arg3: memref<1x8x32xf32, #tpu.memory_space<vmem>>, %arg4: memref<4x32x8xf32, #tpu.memory_space<vmem>>, %arg5: memref<4x1x8xf32, #tpu.memory_space<vmem>>, %arg6: memref<4x8x8xf32, #tpu.memory_space<vmem>>, %arg7: memref<4x1x8xf32, #tpu.memory_space<vmem>>, %arg8: memref<1x4x8x8xf32, #tpu.memory_space<vmem>>) attributes {dimension_semantics = [#tpu.dimension_semantics<parallel>, #tpu.dimension_semantics<parallel>, #tpu.dimension_semantics<parallel>], iteration_bounds = array<i64: 1, 2, 1>, scalar_prefetch = 0 : i64, scratch_operands = 0 : i64, tpu.core_type = #tpu.core_type<tc>, window_params = [{transform_indices = @transform_0, window_bounds = array<i64: 1, 8, 32>}, {transform_indices = @transform_1, window_bounds = array<i64: 4, 32, 8>}, {transform_indices = @transform_2, window_bounds = array<i64: 4, 1, 8>}, {transform_indices = @transform_3, window_bounds = array<i64: 4, 8, 8>}, {transform_indices = @transform_4, window_bounds = array<i64: 4, 1, 8>}, {transform_indices = @transform_5, window_bounds = array<i64: 1, 4, 8, 8>}]} {
    %c0 = arith.constant 0 : index
    %c0_0 = arith.constant 0 : index
    %c0_1 = arith.constant 0 : index
    %0 = vector.load %arg3[%c0, %c0_0, %c0_1] : memref<1x8x32xf32, #tpu.memory_space<vmem>>, vector<1x8x32xf32>
    %1 = vector.shape_cast %0 : vector<1x8x32xf32> to vector<8x32xf32>
    %c0_2 = arith.constant 0 : index
    %c0_3 = arith.constant 0 : index
    %c0_4 = arith.constant 0 : index
    %2 = vector.load %arg4[%c0_2, %c0_3, %c0_4] : memref<4x32x8xf32, #tpu.memory_space<vmem>>, vector<1x32x8xf32>
    %3 = vector.shape_cast %2 : vector<1x32x8xf32> to vector<32x8xf32>
    %cst = arith.constant dense<0.000000e+00> : vector<8x8xf32>
    %4 = tpu.matmul %1, %3, %cst {dimension_numbers = #tpu.dot_dimension_numbers<[1], [0], [0], [1], [0, 0, 1, 1], [], []>} : vector<8x32xf32>, vector<32x8xf32>, vector<8x8xf32> -> vector<8x8xf32>
    %c0_5 = arith.constant 0 : index
    %c0_6 = arith.constant 0 : index
    %c0_7 = arith.constant 0 : index
    %5 = vector.load %arg5[%c0_5, %c0_6, %c0_7] : memref<4x1x8xf32, #tpu.memory_space<vmem>>, vector<1x1x8xf32>
    %6 = vector.shape_cast %5 : vector<1x1x8xf32> to vector<1x8xf32>
    %7 = vector.broadcast %6 : vector<1x8xf32> to vector<8x8xf32>
    %8 = arith.addf %4, %7 : vector<8x8xf32>
    %cst_8 = arith.constant 0.000000e+00 : f32
    %9 = vector.broadcast %cst_8 : f32 to vector<8x8xf32>
    %10 = arith.maximumf %8, %9 : vector<8x8xf32>
    %c0_9 = arith.constant 0 : index
    %c0_10 = arith.constant 0 : index
    %c0_11 = arith.constant 0 : index
    %11 = vector.load %arg6[%c0_9, %c0_10, %c0_11] : memref<4x8x8xf32, #tpu.memory_space<vmem>>, vector<1x8x8xf32>
    %12 = vector.shape_cast %11 : vector<1x8x8xf32> to vector<8x8xf32>
    %cst_12 = arith.constant dense<0.000000e+00> : vector<8x8xf32>
    %13 = tpu.matmul %10, %12, %cst_12 {dimension_numbers = #tpu.dot_dimension_numbers<[1], [0], [0], [1], [0, 0, 1, 1], [], []>} : vector<8x8xf32>, vector<8x8xf32>, vector<8x8xf32> -> vector<8x8xf32>
    %c0_13 = arith.constant 0 : index
    %c0_14 = arith.constant 0 : index
    %c0_15 = arith.constant 0 : index
    %14 = vector.load %arg7[%c0_13, %c0_14, %c0_15] : memref<4x1x8xf32, #tpu.memory_space<vmem>>, vector<1x1x8xf32>
    %15 = vector.shape_cast %14 : vector<1x1x8xf32> to vector<1x8xf32>
    %16 = vector.broadcast %15 : vector<1x8xf32> to vector<8x8xf32>
    %17 = arith.addf %13, %16 : vector<8x8xf32>
    %c0_16 = arith.constant 0 : index
    %c0_17 = arith.constant 0 : index
    %c0_18 = arith.constant 0 : index
    %c0_19 = arith.constant 0 : index
    %18 = vector.load %arg8[%c0_16, %c0_17, %c0_18, %c0_19] : memref<1x4x8x8xf32, #tpu.memory_space<vmem>>, vector<1x1x8x8xf32>
    %19 = vector.shape_cast %18 : vector<1x1x8x8xf32> to vector<8x8xf32>
    %20 = vector.shape_cast %17 : vector<8x8xf32> to vector<1x1x8x8xf32>
    tpu.vector_store %arg8[%c0_16, %c0_17, %c0_18, %c0_19], %20 {strides = array<i32>} : memref<1x4x8x8xf32, #tpu.memory_space<vmem>>, vector<1x1x8x8xf32>,
    %c1 = arith.constant 1 : index
    %c0_20 = arith.constant 0 : index
    %c0_21 = arith.constant 0 : index
    %21 = vector.load %arg4[%c1, %c0_20, %c0_21] : memref<4x32x8xf32, #tpu.memory_space<vmem>>, vector<1x32x8xf32>
    %22 = vector.shape_cast %21 : vector<1x32x8xf32> to vector<32x8xf32>
    %cst_22 = arith.constant dense<0.000000e+00> : vector<8x8xf32>
    %23 = tpu.matmul %1, %22, %cst_22 {dimension_numbers = #tpu.dot_dimension_numbers<[1], [0], [0], [1], [0, 0, 1, 1], [], []>} : vector<8x32xf32>, vector<32x8xf32>, vector<8x8xf32> -> vector<8x8xf32>
    %c1_23 = arith.constant 1 : index
    %c0_24 = arith.constant 0 : index
    %c0_25 = arith.constant 0 : index
    %24 = vector.load %arg5[%c1_23, %c0_24, %c0_25] : memref<4x1x8xf32, #tpu.memory_space<vmem>>, vector<1x1x8xf32>
    %25 = vector.shape_cast %24 : vector<1x1x8xf32> to vector<1x8xf32>
    %26 = vector.broadcast %25 : vector<1x8xf32> to vector<8x8xf32>
    %27 = arith.addf %23, %26 : vector<8x8xf32>
    %cst_26 = arith.constant 0.000000e+00 : f32
    %28 = vector.broadcast %cst_26 : f32 to vector<8x8xf32>
    %29 = arith.maximumf %27, %28 : vector<8x8xf32>
    %c1_27 = arith.constant 1 : index
    %c0_28 = arith.constant 0 : index
    %c0_29 = arith.constant 0 : index
    %30 = vector.load %arg6[%c1_27, %c0_28, %c0_29] : memref<4x8x8xf32, #tpu.memory_space<vmem>>, vector<1x8x8xf32>
    %31 = vector.shape_cast %30 : vector<1x8x8xf32> to vector<8x8xf32>
    %cst_30 = arith.constant dense<0.000000e+00> : vector<8x8xf32>
    %32 = tpu.matmul %29, %31, %cst_30 {dimension_numbers = #tpu.dot_dimension_numbers<[1], [0], [0], [1], [0, 0, 1, 1], [], []>} : vector<8x8xf32>, vector<8x8xf32>, vector<8x8xf32> -> vector<8x8xf32>
    %c1_31 = arith.constant 1 : index
    %c0_32 = arith.constant 0 : index
    %c0_33 = arith.constant 0 : index
    %33 = vector.load %arg7[%c1_31, %c0_32, %c0_33] : memref<4x1x8xf32, #tpu.memory_space<vmem>>, vector<1x1x8xf32>
    %34 = vector.shape_cast %33 : vector<1x1x8xf32> to vector<1x8xf32>
    %35 = vector.broadcast %34 : vector<1x8xf32> to vector<8x8xf32>
    %36 = arith.addf %32, %35 : vector<8x8xf32>
    %c0_34 = arith.constant 0 : index
    %c1_35 = arith.constant 1 : index
    %c0_36 = arith.constant 0 : index
    %c0_37 = arith.constant 0 : index
    %37 = vector.load %arg8[%c0_34, %c1_35, %c0_36, %c0_37] : memref<1x4x8x8xf32, #tpu.memory_space<vmem>>, vector<1x1x8x8xf32>
    %38 = vector.shape_cast %37 : vector<1x1x8x8xf32> to vector<8x8xf32>
    %39 = vector.shape_cast %36 : vector<8x8xf32> to vector<1x1x8x8xf32>
    tpu.vector_store %arg8[%c0_34, %c1_35, %c0_36, %c0_37], %39 {strides = array<i32>} : memref<1x4x8x8xf32, #tpu.memory_space<vmem>>, vector<1x1x8x8xf32>,
    %c2 = arith.constant 2 : index
    %c0_38 = arith.constant 0 : index
    %c0_39 = arith.constant 0 : index
    %40 = vector.load %arg4[%c2, %c0_38, %c0_39] : memref<4x32x8xf32, #tpu.memory_space<vmem>>, vector<1x32x8xf32>
    %41 = vector.shape_cast %40 : vector<1x32x8xf32> to vector<32x8xf32>
    %cst_40 = arith.constant dense<0.000000e+00> : vector<8x8xf32>
    %42 = tpu.matmul %1, %41, %cst_40 {dimension_numbers = #tpu.dot_dimension_numbers<[1], [0], [0], [1], [0, 0, 1, 1], [], []>} : vector<8x32xf32>, vector<32x8xf32>, vector<8x8xf32> -> vector<8x8xf32>
    %c2_41 = arith.constant 2 : index
    %c0_42 = arith.constant 0 : index
    %c0_43 = arith.constant 0 : index
    %43 = vector.load %arg5[%c2_41, %c0_42, %c0_43] : memref<4x1x8xf32, #tpu.memory_space<vmem>>, vector<1x1x8xf32>
    %44 = vector.shape_cast %43 : vector<1x1x8xf32> to vector<1x8xf32>
    %45 = vector.broadcast %44 : vector<1x8xf32> to vector<8x8xf32>
    %46 = arith.addf %42, %45 : vector<8x8xf32>
    %cst_44 = arith.constant 0.000000e+00 : f32
    %47 = vector.broadcast %cst_44 : f32 to vector<8x8xf32>
    %48 = arith.maximumf %46, %47 : vector<8x8xf32>
    %c2_45 = arith.constant 2 : index
    %c0_46 = arith.constant 0 : index
    %c0_47 = arith.constant 0 : index
    %49 = vector.load %arg6[%c2_45, %c0_46, %c0_47] : memref<4x8x8xf32, #tpu.memory_space<vmem>>, vector<1x8x8xf32>
    %50 = vector.shape_cast %49 : vector<1x8x8xf32> to vector<8x8xf32>
    %cst_48 = arith.constant dense<0.000000e+00> : vector<8x8xf32>
    %51 = tpu.matmul %48, %50, %cst_48 {dimension_numbers = #tpu.dot_dimension_numbers<[1], [0], [0], [1], [0, 0, 1, 1], [], []>} : vector<8x8xf32>, vector<8x8xf32>, vector<8x8xf32> -> vector<8x8xf32>
    %c2_49 = arith.constant 2 : index
    %c0_50 = arith.constant 0 : index
    %c0_51 = arith.constant 0 : index
    %52 = vector.load %arg7[%c2_49, %c0_50, %c0_51] : memref<4x1x8xf32, #tpu.memory_space<vmem>>, vector<1x1x8xf32>
    %53 = vector.shape_cast %52 : vector<1x1x8xf32> to vector<1x8xf32>
    %54 = vector.broadcast %53 : vector<1x8xf32> to vector<8x8xf32>
    %55 = arith.addf %51, %54 : vector<8x8xf32>
    %c0_52 = arith.constant 0 : index
    %c2_53 = arith.constant 2 : index
    %c0_54 = arith.constant 0 : index
    %c0_55 = arith.constant 0 : index
    %56 = vector.load %arg8[%c0_52, %c2_53, %c0_54, %c0_55] : memref<1x4x8x8xf32, #tpu.memory_space<vmem>>, vector<1x1x8x8xf32>
    %57 = vector.shape_cast %56 : vector<1x1x8x8xf32> to vector<8x8xf32>
    %58 = vector.shape_cast %55 : vector<8x8xf32> to vector<1x1x8x8xf32>
    tpu.vector_store %arg8[%c0_52, %c2_53, %c0_54, %c0_55], %58 {strides = array<i32>} : memref<1x4x8x8xf32, #tpu.memory_space<vmem>>, vector<1x1x8x8xf32>,
    %c3 = arith.constant 3 : index
    %c0_56 = arith.constant 0 : index
    %c0_57 = arith.constant 0 : index
    %59 = vector.load %arg4[%c3, %c0_56, %c0_57] : memref<4x32x8xf32, #tpu.memory_space<vmem>>, vector<1x32x8xf32>
    %60 = vector.shape_cast %59 : vector<1x32x8xf32> to vector<32x8xf32>
    %cst_58 = arith.constant dense<0.000000e+00> : vector<8x8xf32>
    %61 = tpu.matmul %1, %60, %cst_58 {dimension_numbers = #tpu.dot_dimension_numbers<[1], [0], [0], [1], [0, 0, 1, 1], [], []>} : vector<8x32xf32>, vector<32x8xf32>, vector<8x8xf32> -> vector<8x8xf32>
    %c3_59 = arith.constant 3 : index
    %c0_60 = arith.constant 0 : index
    %c0_61 = arith.constant 0 : index
    %62 = vector.load %arg5[%c3_59, %c0_60, %c0_61] : memref<4x1x8xf32, #tpu.memory_space<vmem>>, vector<1x1x8xf32>
    %63 = vector.shape_cast %62 : vector<1x1x8xf32> to vector<1x8xf32>
    %64 = vector.broadcast %63 : vector<1x8xf32> to vector<8x8xf32>
    %65 = arith.addf %61, %64 : vector<8x8xf32>
    %cst_62 = arith.constant 0.000000e+00 : f32
    %66 = vector.broadcast %cst_62 : f32 to vector<8x8xf32>
    %67 = arith.maximumf %65, %66 : vector<8x8xf32>
    %c3_63 = arith.constant 3 : index
    %c0_64 = arith.constant 0 : index
    %c0_65 = arith.constant 0 : index
    %68 = vector.load %arg6[%c3_63, %c0_64, %c0_65] : memref<4x8x8xf32, #tpu.memory_space<vmem>>, vector<1x8x8xf32>
    %69 = vector.shape_cast %68 : vector<1x8x8xf32> to vector<8x8xf32>
    %cst_66 = arith.constant dense<0.000000e+00> : vector<8x8xf32>
    %70 = tpu.matmul %67, %69, %cst_66 {dimension_numbers = #tpu.dot_dimension_numbers<[1], [0], [0], [1], [0, 0, 1, 1], [], []>} : vector<8x8xf32>, vector<8x8xf32>, vector<8x8xf32> -> vector<8x8xf32>
    %c3_67 = arith.constant 3 : index
    %c0_68 = arith.constant 0 : index
    %c0_69 = arith.constant 0 : index
    %71 = vector.load %arg7[%c3_67, %c0_68, %c0_69] : memref<4x1x8xf32, #tpu.memory_space<vmem>>, vector<1x1x8xf32>
    %72 = vector.shape_cast %71 : vector<1x1x8xf32> to vector<1x8xf32>
    %73 = vector.broadcast %72 : vector<1x8xf32> to vector<8x8xf32>
    %74 = arith.addf %70, %73 : vector<8x8xf32>
    %c0_70 = arith.constant 0 : index
    %c3_71 = arith.constant 3 : index
    %c0_72 = arith.constant 0 : index
    %c0_73 = arith.constant 0 : index
    %75 = vector.load %arg8[%c0_70, %c3_71, %c0_72, %c0_73] : memref<1x4x8x8xf32, #tpu.memory_space<vmem>>, vector<1x1x8x8xf32>
    %76 = vector.shape_cast %75 : vector<1x1x8x8xf32> to vector<8x8xf32>
    %77 = vector.shape_cast %74 : vector<8x8xf32> to vector<1x1x8x8xf32>
    tpu.vector_store %arg8[%c0_70, %c3_71, %c0_72, %c0_73], %77 {strides = array<i32>} : memref<1x4x8x8xf32, #tpu.memory_space<vmem>>, vector<1x1x8x8xf32>,
    return
  }
  func.func @transform_0(%arg0: i32, %arg1: i32, %arg2: i32) -> (i32, i32, i32) {
    %c0_i32 = arith.constant 0 : i32
    %c0_i32_0 = arith.constant 0 : i32
    return %arg1, %arg2, %c0_i32 : i32, i32, i32
  }
  func.func @transform_1(%arg0: i32, %arg1: i32, %arg2: i32) -> (i32, i32, i32) {
    %c0_i32 = arith.constant 0 : i32
    %c0_i32_0 = arith.constant 0 : i32
    %c0_i32_1 = arith.constant 0 : i32
    return %arg0, %c0_i32, %c0_i32_0 : i32, i32, i32
  }
  func.func @transform_2(%arg0: i32, %arg1: i32, %arg2: i32) -> (i32, i32, i32) {
    %c0_i32 = arith.constant 0 : i32
    %c0_i32_0 = arith.constant 0 : i32
    %c0_i32_1 = arith.constant 0 : i32
    return %arg0, %c0_i32, %c0_i32_0 : i32, i32, i32
  }
  func.func @transform_3(%arg0: i32, %arg1: i32, %arg2: i32) -> (i32, i32, i32) {
    %c0_i32 = arith.constant 0 : i32
    %c0_i32_0 = arith.constant 0 : i32
    %c0_i32_1 = arith.constant 0 : i32
    return %arg0, %c0_i32, %c0_i32_0 : i32, i32, i32
  }
  func.func @transform_4(%arg0: i32, %arg1: i32, %arg2: i32) -> (i32, i32, i32) {
    %c0_i32 = arith.constant 0 : i32
    %c0_i32_0 = arith.constant 0 : i32
    %c0_i32_1 = arith.constant 0 : i32
    return %arg0, %c0_i32, %c0_i32_0 : i32, i32, i32
  }
  func.func @transform_5(%arg0: i32, %arg1: i32, %arg2: i32) -> (i32, i32, i32, i32) {
    %c0_i32 = arith.constant 0 : i32
    %c0_i32_0 = arith.constant 0 : i32
    return %arg1, %arg0, %arg2, %c0_i32 : i32, i32, i32, i32
  }
}

</mosaic_0001>

<llo_original>
// kernel: tpu_custom_call.1
$region0: #{tpu_custom_call.1}
  #allocation0 [shape = 'u32[]', space=smem, size = 0x4, offset = 0x4, fixed_abs, tag = 'smem constant byte address 0x4 - core index']
  #allocation1 [shape = 'u32[72,128]{1,0:T(1,128)}', space=vmem, size = 0x9000, scoped, tag = 'internal scratch']
  %s0 = inlined_call_operand.vmem [shape: f32[2,8,32], index: 0, kind: input, shape index: {}]
  %s1 = inlined_call_operand.vmem [shape: f32[4,32,8], index: 1, kind: input, shape index: {}]
  %s2 = inlined_call_operand.vmem [shape: f32[4,1,8], index: 2, kind: input, shape index: {}]
  %s3 = inlined_call_operand.vmem [shape: f32[4,8,8], index: 3, kind: input, shape index: {}]
  %s4 = inlined_call_operand.vmem [shape: f32[4,1,8], index: 4, kind: input, shape index: {}]
  %s5 = inlined_call_operand.hbm [shape: f32[2,4,8,8], index: 5, kind: output, shape index: {}]
  %s6 = sld [smem:[#allocation0]]
  $region53: #{tpu_custom_call.1} parent=0
    _
  %s8 = ssub.s32 1, %s6
  %s9 = scalar_select 0, %s8, %s6
  $region1: #{tpu_custom_call.1} parent=0
    #allocation2 [shape = 'u8[32768]{0}', space=vmem, size = 0x8000, scoped, tag = 'output window, operand 0']
    #allocation3 [shape = 's32[2]{0}', space=sflag, size = 0x8, scoped, tag = 'scoped memory for tpu_custom_call.1']
    %10 = vsyncpa [#allocation3], 0
    %s11 = scalar_lea.sflag [#allocation3], 1
    %12 = vsyncpa %s11, 0
    loop: start=0, step=1, limit=4
    $region2: #{tpu_custom_call.1} parent=1 // loop_pre_header
      _
    $region3: #{tpu_custom_call.1} parent=1 // loop_header
      %s14 = sphi 0, %s18
      %p15 = scmp.ge.s32.totalorder %s14, 4
      %s21 = sphi 0, %s40
      %s22 = sphi 0, %s36
      %s23 = sphi 0, %s32
      %s24 = sphi 0, %s21
      %s25 = sphi 0, %s22
      %s26 = sphi 0, %s23
      %s27 = sphi 0, %s24
      %s28 = sphi 0, %s25
      %s29 = sphi 0, %s26
      %s45 = sphi 0, %s47
      %s48 = sphi 0, %s45
      %s49 = sphi 0, %s48
      %s65 = sphi 0, %s49
      %s71 = sphi 0, %s73
      %s74 = sphi 0, %s71
      %s75 = sphi 0, %s74
      %s91 = sphi 0, %s75
      %s97 = sphi 0, %s99
      %s100 = sphi 0, %s97
      %s101 = sphi 0, %s100
      %s117 = sphi 0, %s101
      %s123 = sphi 0, %s125
      %s126 = sphi 0, %s123
      %s127 = sphi 0, %s126
      %s143 = sphi 0, %s127
      %s149 = sphi 0, %s151
      %s152 = sphi 0, %s149
      %s153 = sphi 0, %s152
      %s169 = sphi 0, %s153
      %s179 = sphi 0, %s181
      %s182 = sphi 0, %s179
      %s183 = sphi 0, %s182
      %s199 = sphi 0, %s183
    $region4: #{tpu_custom_call.1} parent=1 // loop_header_branch
      %17 = sbr.rel (%p15) target = $region8
    $region5: #{tpu_custom_call.1} parent=1 // loop_body
      %s19 = ssub.s32 %s14, 1
      %s20 = ssub.s32 %s14, 2
      %s30 = sadd.s32 1, %s23
      %p31 = scmp.ge.s32.totalorder %s30, 1
      %s32 = scalar_select %p31, 0, %s30
      %s33 = sadd.s32 1, %s22
      %s34 = scalar_select %p31, %s33, %s22
      %p35 = scmp.ge.s32.totalorder %s34, 2
      %s36 = scalar_select %p35, 0, %s34
      %s37 = sadd.s32 1, %s21
      %s38 = scalar_select %p35, %s37, %s21
      %p39 = scmp.ge.s32.totalorder %s38, 1
      %s40 = scalar_select %p39, 0, %s38
      %s41 = ssub.s32 %s22, %s36
      %s42 = ssub.s32 %s23, %s32
      %s43 = sor.u32 %s41, %s42
      %p44 = scmp.eq.s32.totalorder %s43, 0
      %s46 = sadd.s32 %s45, 1
      %s47 = scalar_select %p44, %s45, %s46
      %p50 = pneg %p44
      %p51 = scmp.eq.s32.totalorder %s14, 1
      %p52 = por %p50, %p51
      %p53 = scmp.ne.s32.totalorder %s45, %s48
      %p54 = scmp.eq.s32.totalorder %s14, 0
      %p55 = por %p53, %p54
      %p56 = scmp.ne.s32.totalorder %s45, %s48
      %p57 = scmp.eq.s32.totalorder %s19, 1
      %p58 = por %p56, %p57
      %p59 = scmp.ne.s32.totalorder %s48, %s49
      %p60 = scmp.eq.s32.totalorder %s19, 0
      %p61 = por %p59, %p60
      %p62 = scmp.ne.s32.totalorder %s48, %s49
      %p63 = scmp.eq.s32.totalorder %s20, 1
      %p64 = por %p62, %p63
      %p66 = scmp.ne.s32.totalorder %s49, %s65
      %p67 = scmp.eq.s32.totalorder %s20, 0
      %p68 = por %p66, %p67
      %s69 = ssub.s32 %s21, %s40
      %p70 = scmp.eq.s32.totalorder %s69, 0
      %s72 = sadd.s32 %s71, 1
      %s73 = scalar_select %p70, %s71, %s72
      %p76 = pneg %p70
      %p77 = scmp.eq.s32.totalorder %s14, 1
      %p78 = por %p76, %p77
      %p79 = scmp.ne.s32.totalorder %s71, %s74
      %p80 = scmp.eq.s32.totalorder %s14, 0
      %p81 = por %p79, %p80
      %p82 = scmp.ne.s32.totalorder %s71, %s74
      %p83 = scmp.eq.s32.totalorder %s19, 1
      %p84 = por %p82, %p83
      %p85 = scmp.ne.s32.totalorder %s74, %s75
      %p86 = scmp.eq.s32.totalorder %s19, 0
      %p87 = por %p85, %p86
      %p88 = scmp.ne.s32.totalorder %s74, %s75
      %p89 = scmp.eq.s32.totalorder %s20, 1
      %p90 = por %p88, %p89
      %p92 = scmp.ne.s32.totalorder %s75, %s91
      %p93 = scmp.eq.s32.totalorder %s20, 0
      %p94 = por %p92, %p93
      %s95 = ssub.s32 %s21, %s40
      %p96 = scmp.eq.s32.totalorder %s95, 0
      %s98 = sadd.s32 %s97, 1
      %s99 = scalar_select %p96, %s97, %s98
      %p102 = pneg %p96
      %p103 = scmp.eq.s32.totalorder %s14, 1
      %p104 = por %p102, %p103
      %p105 = scmp.ne.s32.totalorder %s97, %s100
      %p106 = scmp.eq.s32.totalorder %s14, 0
      %p107 = por %p105, %p106
      %p108 = scmp.ne.s32.totalorder %s97, %s100
      %p109 = scmp.eq.s32.totalorder %s19, 1
      %p110 = por %p108, %p109
      %p111 = scmp.ne.s32.totalorder %s100, %s101
      %p112 = scmp.eq.s32.totalorder %s19, 0
      %p113 = por %p111, %p112
      %p114 = scmp.ne.s32.totalorder %s100, %s101
      %p115 = scmp.eq.s32.totalorder %s20, 1
      %p116 = por %p114, %p115
      %p118 = scmp.ne.s32.totalorder %s101, %s117
      %p119 = scmp.eq.s32.totalorder %s20, 0
      %p120 = por %p118, %p119
      %s121 = ssub.s32 %s21, %s40
      %p122 = scmp.eq.s32.totalorder %s121, 0
      %s124 = sadd.s32 %s123, 1
      %s125 = scalar_select %p122, %s123, %s124
      %p128 = pneg %p122
      %p129 = scmp.eq.s32.totalorder %s14, 1
      %p130 = por %p128, %p129
      %p131 = scmp.ne.s32.totalorder %s123, %s126
      %p132 = scmp.eq.s32.totalorder %s14, 0
      %p133 = por %p131, %p132
      %p134 = scmp.ne.s32.totalorder %s123, %s126
      %p135 = scmp.eq.s32.totalorder %s19, 1
      %p136 = por %p134, %p135
      %p137 = scmp.ne.s32.totalorder %s126, %s127
      %p138 = scmp.eq.s32.totalorder %s19, 0
      %p139 = por %p137, %p138
      %p140 = scmp.ne.s32.totalorder %s126, %s127
      %p141 = scmp.eq.s32.totalorder %s20, 1
      %p142 = por %p140, %p141
      %p144 = scmp.ne.s32.totalorder %s127, %s143
      %p145 = scmp.eq.s32.totalorder %s20, 0
      %p146 = por %p144, %p145
      %s147 = ssub.s32 %s21, %s40
      %p148 = scmp.eq.s32.totalorder %s147, 0
      %s150 = sadd.s32 %s149, 1
      %s151 = scalar_select %p148, %s149, %s150
      %p154 = pneg %p148
      %p155 = scmp.eq.s32.totalorder %s14, 1
      %p156 = por %p154, %p155
      %p157 = scmp.ne.s32.totalorder %s149, %s152
      %p158 = scmp.eq.s32.totalorder %s14, 0
      %p159 = por %p157, %p158
      %p160 = scmp.ne.s32.totalorder %s149, %s152
      %p161 = scmp.eq.s32.totalorder %s19, 1
      %p162 = por %p160, %p161
      %p163 = scmp.ne.s32.totalorder %s152, %s153
      %p164 = scmp.eq.s32.totalorder %s19, 0
      %p165 = por %p163, %p164
      %p166 = scmp.ne.s32.totalorder %s152, %s153
      %p167 = scmp.eq.s32.totalorder %s20, 1
      %p168 = por %p166, %p167
      %p170 = scmp.ne.s32.totalorder %s153, %s169
      %p171 = scmp.eq.s32.totalorder %s20, 0
      %p172 = por %p170, %p171
      %s173 = ssub.s32 %s22, %s36
      %s174 = ssub.s32 %s21, %s40
      %s175 = sor.u32 %s173, %s174
      %s176 = ssub.s32 %s23, %s32
      %s177 = sor.u32 %s175, %s176
      %p178 = scmp.eq.s32.totalorder %s177, 0
      %s180 = sadd.s32 %s179, 1
      %s181 = scalar_select %p178, %s179, %s180
      %p184 = pneg %p178
      %p185 = scmp.eq.s32.totalorder %s14, 1
      %p186 = por %p184, %p185
      %p187 = scmp.ne.s32.totalorder %s179, %s182
      %p188 = scmp.eq.s32.totalorder %s14, 0
      %p189 = por %p187, %p188
      %p190 = scmp.ne.s32.totalorder %s179, %s182
      %p191 = scmp.eq.s32.totalorder %s19, 1
      %p192 = por %p190, %p191
      %p193 = scmp.ne.s32.totalorder %s182, %s183
      %p194 = scmp.eq.s32.totalorder %s19, 0
      %p195 = por %p193, %p194
      %p196 = scmp.ne.s32.totalorder %s182, %s183
      %p197 = scmp.eq.s32.totalorder %s20, 1
      %p198 = por %p196, %p197
      %p200 = scmp.ne.s32.totalorder %s183, %s199
      %p201 = scmp.eq.s32.totalorder %s20, 0
      %p202 = por %p200, %p201
      %p203 = scmp.le.s32.totalorder 1, %s14
      %p204 = scmp.lt.s32.totalorder %s14, 3
      %p205 = pnand %p203, %p204
      %p206 = pneg %p205
      // Predicated region
      $region9: #{tpu_custom_call.1} parent=5 // pred_check
        _
      $region10: #{tpu_custom_call.1} parent=5 // pred_check_branch
        %208 = sbr.rel (%p205) target = $region12
      $region11: #{tpu_custom_call.1} parent=5 // pred_region
        %s209 = ssub.s32 %s14, 1
        // Predicated region
        $region13: #{tpu_custom_call.1} parent=11 // pred_check
          %p210 = pneg %p87
        $region14: #{tpu_custom_call.1} parent=11 // pred_check_branch
          %212 = sbr.rel (%p210) target = $region16
        $region15: #{tpu_custom_call.1} parent=11 // pred_region
          %s213 = smul.u32 4, %s24
          %p214 = scmp.lt.s32.totalorder %s213, 3
          %s215 = scalar_select %p214, %s213, 3
          %s216 = smul.addr %s215, 4
          %s217 = smul.addr %s216, 8
          %s218 = scalar_lea.vmem %s1, %s217
          %s219 = smul.u32 4, %s24
        $region16: #{tpu_custom_call.1} parent=11 // pred_fallthru
          _
        // Predicated region
        $region17: #{tpu_custom_call.1} parent=11 // pred_check
          %p220 = pneg %p113
        $region18: #{tpu_custom_call.1} parent=11 // pred_check_branch
          %222 = sbr.rel (%p220) target = $region20
        $region19: #{tpu_custom_call.1} parent=11 // pred_region
          %s223 = smul.u32 4, %s24
          %p224 = scmp.lt.s32.totalorder %s223, 3
          %s225 = scalar_select %p224, %s223, 3
          %s226 = scalar_lea.vmem %s2, %s225
          %s227 = smul.u32 4, %s24
        $region20: #{tpu_custom_call.1} parent=11 // pred_fallthru
          _
        // Predicated region
        $region21: #{tpu_custom_call.1} parent=11 // pred_check
          %p228 = pneg %p139
        $region22: #{tpu_custom_call.1} parent=11 // pred_check_branch
          %230 = sbr.rel (%p228) target = $region24
        $region23: #{tpu_custom_call.1} parent=11 // pred_region
          %s231 = smul.u32 4, %s24
          %p232 = scmp.lt.s32.totalorder %s231, 3
          %s233 = scalar_select %p232, %s231, 3
          %s234 = smul.addr %s233, 8
          %s235 = scalar_lea.vmem %s3, %s234
          %s236 = smul.u32 4, %s24
        $region24: #{tpu_custom_call.1} parent=11 // pred_fallthru
          _
        // Predicated region
        $region25: #{tpu_custom_call.1} parent=11 // pred_check
          %p237 = pneg %p165
        $region26: #{tpu_custom_call.1} parent=11 // pred_check_branch
          %239 = sbr.rel (%p237) target = $region28
        $region27: #{tpu_custom_call.1} parent=11 // pred_region
          %s240 = smul.u32 4, %s24
          %p241 = scmp.lt.s32.totalorder %s240, 3
          %s242 = scalar_select %p241, %s240, 3
          %s243 = scalar_lea.vmem %s4, %s242
          %s244 = smul.u32 4, %s24
        $region28: #{tpu_custom_call.1} parent=11 // pred_fallthru
          _
      $region12: #{tpu_custom_call.1} parent=5 // pred_fallthru
        _
      %p245 = scmp.lt.s32.totalorder %s14, 2
      // Predicated region
      $region29: #{tpu_custom_call.1} parent=5 // pred_check
        %p246 = pneg %p245
      $region30: #{tpu_custom_call.1} parent=5 // pred_check_branch
        %248 = sbr.rel (%p246) target = $region32
      $region31: #{tpu_custom_call.1} parent=5 // pred_region
        // Predicated region
        $region33: #{tpu_custom_call.1} parent=31 // pred_check
          %p249 = pneg %p55
        $region34: #{tpu_custom_call.1} parent=31 // pred_check_branch
          %251 = sbr.rel (%p249) target = $region36
        $region35: #{tpu_custom_call.1} parent=31 // pred_region
          %p252 = scmp.lt.s32.totalorder %s22, 1
          %s253 = scalar_select %p252, %s22, 1
          %p254 = scmp.lt.s32.totalorder %s23, 0
          %s255 = scalar_select %p254, %s23, 0
          %s256 = sadd.s32 %s255, %s253
          %s257 = smul.addr %s256, 8
          %s258 = scalar_lea.vmem %s0, %s257
        $region36: #{tpu_custom_call.1} parent=31 // pred_fallthru
          _
      $region32: #{tpu_custom_call.1} parent=5 // pred_fallthru
        _
      %p259 = scmp.le.s32.totalorder 1, %s14
      %p260 = scmp.lt.s32.totalorder %s14, 3
      %p261 = pnand %p259, %p260
      %p262 = pneg %p261
      // Predicated region
      $region37: #{tpu_custom_call.1} parent=5 // pred_check
        _
      $region38: #{tpu_custom_call.1} parent=5 // pred_check_branch
        %264 = sbr.rel (%p261) target = $region40
      $region39: #{tpu_custom_call.1} parent=5 // pred_region
        %s265 = ssub.s32 %s14, 1
        %p266 = scmp.lt.s32.totalorder %s25, 1
        %s267 = scalar_select %p266, %s25, 1
        %p268 = scmp.lt.s32.totalorder %s26, 0
        %s269 = scalar_select %p268, %s26, 0
        %s270 = sadd.s32 %s269, %s267
        %s271 = smul.addr %s270, 8
        %s272 = scalar_lea.vmem %s0, %s271
        %p273 = pneg %p61
        %p274 = pneg %p58
        %s275 = smul.u32 4, %s24
        %p276 = scmp.lt.s32.totalorder %s275, 3
        %s277 = scalar_select %p276, %s275, 3
        %s278 = smul.addr %s277, 4
        %s279 = smul.addr %s278, 8
        %s280 = scalar_lea.vmem %s1, %s279
        %p281 = pneg %p87
        %p282 = pneg %p84
        %s283 = smul.u32 4, %s24
        %p284 = scmp.lt.s32.totalorder %s283, 3
        %s285 = scalar_select %p284, %s283, 3
        %s286 = scalar_lea.vmem %s2, %s285
        %p287 = pneg %p113
        %p288 = pneg %p110
        %s289 = smul.u32 4, %s24
        %p290 = scmp.lt.s32.totalorder %s289, 3
        %s291 = scalar_select %p290, %s289, 3
        %s292 = smul.addr %s291, 8
        %s293 = scalar_lea.vmem %s3, %s292
        %p294 = pneg %p139
        %p295 = pneg %p136
        %s296 = smul.u32 4, %s24
        %p297 = scmp.lt.s32.totalorder %s296, 3
        %s298 = scalar_select %p297, %s296, 3
        %s299 = scalar_lea.vmem %s4, %s298
        %p300 = pneg %p165
        %p301 = pneg %p162
        %p302 = pneg %p195
        %p303 = pneg %p192
        %s304 = sand.u32 %s182, 1
        %s305 = scalar_lea.sflag [#allocation3], %s304
        %s306 = sand.u32 %s182, 1
        %s307 = smul.addr %s306, 32
        %s308 = scalar_lea.vmem [#allocation2], %s307
        %p309 = scmp.lt.s32.totalorder %s25, 1
        %s310 = scalar_select %p309, %s25, 1
        %p311 = scmp.lt.s32.totalorder %s26, 0
        %s312 = scalar_select %p311, %s26, 0
        %s313 = sadd.s32 %s312, %s310
        %s314 = smul.addr %s313, 8
        %s315 = scalar_lea.vmem %s0, %s314
        %s316 = smul.u32 4, %s24
        %p317 = scmp.lt.s32.totalorder %s316, 3
        %s318 = scalar_select %p317, %s316, 3
        %s319 = smul.addr %s318, 4
        %s320 = smul.addr %s319, 8
        %s321 = scalar_lea.vmem %s1, %s320
        %s322 = smul.u32 4, %s24
        %s323 = smul.u32 4, %s24
        %p324 = scmp.lt.s32.totalorder %s323, 3
        %s325 = scalar_select %p324, %s323, 3
        %s326 = scalar_lea.vmem %s2, %s325
        %s327 = smul.u32 4, %s24
        %s328 = smul.u32 4, %s24
        %p329 = scmp.lt.s32.totalorder %s328, 3
        %s330 = scalar_select %p329, %s328, 3
        %s331 = smul.addr %s330, 8
        %s332 = scalar_lea.vmem %s3, %s331
        %s333 = smul.u32 4, %s24
        %s334 = smul.u32 4, %s24
        %p335 = scmp.lt.s32.totalorder %s334, 3
        %s336 = scalar_select %p335, %s334, 3
        %s337 = scalar_lea.vmem %s4, %s336
        %s338 = smul.u32 4, %s24
        %s339 = smul.u32 4, %s24
        %v340 = vld [vmem:[%s315] sm:$0xff]
        %v341 = vld [vmem:[%s321] sm:$0xff]
        %v342 = vld [vmem:[%s321 + $0x8] sm:$0xff]
        %v343 = vld [vmem:[%s321 + $0x10] sm:$0xff]
        %v344 = vld [vmem:[%s321 + $0x18] sm:$0xff]
        %v345 = vld [vmem:[%s326] sm:$0x1]
        %v347 = vperm.slane %v345, 0
        %vm349 = vcmask 261120
        %v351 = vsel %vm349, %v340, 0
        %353 = vmatpush.msra.mxu0 0.0
        %354 = vmatpush.msra.mxu0 0.0
        %355 = vmatpush.msra.mxu0 0.0
        %356 = vmatpush.msra.mxu0 0.0
        %357 = vmatpush.msra.mxu0 0.0
        %358 = vmatpush.msra.mxu0 0.0
        %359 = vmatpush.msra.mxu0 0.0
        %360 = vmatpush.msra.mxu0 0.0
        %361 = vmatpush.msra.mxu0 0.0
        %362 = vmatpush.msra.mxu0 0.0
        %363 = vmatpush.msra.mxu0 0.0
        %364 = vmatpush.msra.mxu0 0.0
        %365 = vmatpush.msra.mxu0 %v344
        %366 = vmatpush.msra.mxu0 %v343
        %367 = vmatpush.msra.mxu0 %v342
        %368 = vmatpush.msra.mxu0 %v341
        %369 = vmatmul.f32.gmra.mxu0 %v351
        %v370 = vpop.f32.mrf.mxu0
        %v371 = vadd.f32 %v347, %v370
        %372 = vdwg.mxu0
        %v373 = vmax.f32 %v371, 0.0
        %v374 = vld [vmem:[%s332] sm:$0xff]
        %v375 = vld [vmem:[%s337] sm:$0x1]
        %v377 = vperm.slane %v375, 0
        %vm379 = vcmask 64512
        %v381 = vsel %vm379, %v373, 0
        %383 = vmatpush.msra.mxu0 0.0
        %384 = vmatpush.msra.mxu0 0.0
        %385 = vmatpush.msra.mxu0 0.0
        %386 = vmatpush.msra.mxu0 0.0
        %387 = vmatpush.msra.mxu0 0.0
        %388 = vmatpush.msra.mxu0 0.0
        %389 = vmatpush.msra.mxu0 0.0
        %390 = vmatpush.msra.mxu0 0.0
        %391 = vmatpush.msra.mxu0 0.0
        %392 = vmatpush.msra.mxu0 0.0
        %393 = vmatpush.msra.mxu0 0.0
        %394 = vmatpush.msra.mxu0 0.0
        %395 = vmatpush.msra.mxu0 0.0
        %396 = vmatpush.msra.mxu0 0.0
        %397 = vmatpush.msra.mxu0 0.0
        %398 = vmatpush.msra.mxu0 %v374
        %399 = vmatmul.f32.gmra.mxu0 %v381
        %v400 = vpop.f32.mrf.mxu0
        %v401 = vadd.f32 %v377, %v400
        %402 = vdwg.mxu0
        %403 = vst.msk [vmem:[%s308] sm:$0xff] %vm379, %v401
        %s404 = scalar_lea.vmem %s321, 32
        %v405 = vld [vmem:[%s404] sm:$0xff]
        %v406 = vld [vmem:[%s404 + $0x8] sm:$0xff]
        %v407 = vld [vmem:[%s404 + $0x10] sm:$0xff]
        %v408 = vld [vmem:[%s404 + $0x18] sm:$0xff]
        %s409 = scalar_lea.vmem %s326, 1
        %v410 = vld [vmem:[%s409] sm:$0x1]
        %v412 = vperm.slane %v410, 0
        %414 = vmatpush.msra.mxu0 0.0
        %415 = vmatpush.msra.mxu0 0.0
        %416 = vmatpush.msra.mxu0 0.0
        %417 = vmatpush.msra.mxu0 0.0
        %418 = vmatpush.msra.mxu0 0.0
        %419 = vmatpush.msra.mxu0 0.0
        %420 = vmatpush.msra.mxu0 0.0
        %421 = vmatpush.msra.mxu0 0.0
        %422 = vmatpush.msra.mxu0 0.0
        %423 = vmatpush.msra.mxu0 0.0
        %424 = vmatpush.msra.mxu0 0.0
        %425 = vmatpush.msra.mxu0 0.0
        %426 = vmatpush.msra.mxu0 %v408
        %427 = vmatpush.msra.mxu0 %v407
        %428 = vmatpush.msra.mxu0 %v406
        %429 = vmatpush.msra.mxu0 %v405
        %430 = vmatmul.f32.gmra.mxu0 %v351
        %v431 = vpop.f32.mrf.mxu0
        %v432 = vadd.f32 %v412, %v431
        %433 = vdwg.mxu0
        %v434 = vmax.f32 %v432, 0.0
        %s435 = scalar_lea.vmem %s332, 8
        %v436 = vld [vmem:[%s435] sm:$0xff]
        %s437 = scalar_lea.vmem %s337, 1
        %v438 = vld [vmem:[%s437] sm:$0x1]
        %v440 = vperm.slane %v438, 0
        %v443 = vsel %vm379, %v434, 0
        %445 = vmatpush.msra.mxu0 0.0
        %446 = vmatpush.msra.mxu0 0.0
        %447 = vmatpush.msra.mxu0 0.0
        %448 = vmatpush.msra.mxu0 0.0
        %449 = vmatpush.msra.mxu0 0.0
        %450 = vmatpush.msra.mxu0 0.0
        %451 = vmatpush.msra.mxu0 0.0
        %452 = vmatpush.msra.mxu0 0.0
        %453 = vmatpush.msra.mxu0 0.0
        %454 = vmatpush.msra.mxu0 0.0
        %455 = vmatpush.msra.mxu0 0.0
        %456 = vmatpush.msra.mxu0 0.0
        %457 = vmatpush.msra.mxu0 0.0
        %458 = vmatpush.msra.mxu0 0.0
        %459 = vmatpush.msra.mxu0 0.0
        %460 = vmatpush.msra.mxu0 %v436
        %461 = vmatmul.f32.gmra.mxu0 %v443
        %v462 = vpop.f32.mrf.mxu0
        %v463 = vadd.f32 %v440, %v462
        %464 = vdwg.mxu0
        %s465 = scalar_lea.vmem %s308, 8 [#allocation2]
        %466 = vst.msk [vmem:[%s465] sm:$0xff] %vm379, %v463
        %s467 = scalar_lea.vmem %s321, 64
        %v468 = vld [vmem:[%s467] sm:$0xff]
        %v469 = vld [vmem:[%s467 + $0x8] sm:$0xff]
        %v470 = vld [vmem:[%s467 + $0x10] sm:$0xff]
        %v471 = vld [vmem:[%s467 + $0x18] sm:$0xff]
        %s472 = scalar_lea.vmem %s326, 2
        %v473 = vld [vmem:[%s472] sm:$0x1]
        %v475 = vperm.slane %v473, 0
        %477 = vmatpush.msra.mxu0 0.0
        %478 = vmatpush.msra.mxu0 0.0
        %479 = vmatpush.msra.mxu0 0.0
        %480 = vmatpush.msra.mxu0 0.0
        %481 = vmatpush.msra.mxu0 0.0
        %482 = vmatpush.msra.mxu0 0.0
        %483 = vmatpush.msra.mxu0 0.0
        %484 = vmatpush.msra.mxu0 0.0
        %485 = vmatpush.msra.mxu0 0.0
        %486 = vmatpush.msra.mxu0 0.0
        %487 = vmatpush.msra.mxu0 0.0
        %488 = vmatpush.msra.mxu0 0.0
        %489 = vmatpush.msra.mxu0 %v471
        %490 = vmatpush.msra.mxu0 %v470
        %491 = vmatpush.msra.mxu0 %v469
        %492 = vmatpush.msra.mxu0 %v468
        %493 = vmatmul.f32.gmra.mxu0 %v351
        %v494 = vpop.f32.mrf.mxu0
        %v495 = vadd.f32 %v475, %v494
        %496 = vdwg.mxu0
        %v497 = vmax.f32 %v495, 0.0
        %s498 = scalar_lea.vmem %s332, 16
        %v499 = vld [vmem:[%s498] sm:$0xff]
        %s500 = scalar_lea.vmem %s337, 2
        %v501 = vld [vmem:[%s500] sm:$0x1]
        %v503 = vperm.slane %v501, 0
        %v506 = vsel %vm379, %v497, 0
        %508 = vmatpush.msra.mxu0 0.0
        %509 = vmatpush.msra.mxu0 0.0
        %510 = vmatpush.msra.mxu0 0.0
        %511 = vmatpush.msra.mxu0 0.0
        %512 = vmatpush.msra.mxu0 0.0
        %513 = vmatpush.msra.mxu0 0.0
        %514 = vmatpush.msra.mxu0 0.0
        %515 = vmatpush.msra.mxu0 0.0
        %516 = vmatpush.msra.mxu0 0.0
        %517 = vmatpush.msra.mxu0 0.0
        %518 = vmatpush.msra.mxu0 0.0
        %519 = vmatpush.msra.mxu0 0.0
        %520 = vmatpush.msra.mxu0 0.0
        %521 = vmatpush.msra.mxu0 0.0
        %522 = vmatpush.msra.mxu0 0.0
        %523 = vmatpush.msra.mxu0 %v499
        %524 = vmatmul.f32.gmra.mxu0 %v506
        %v525 = vpop.f32.mrf.mxu0
        %v526 = vadd.f32 %v503, %v525
        %527 = vdwg.mxu0
        %s528 = scalar_lea.vmem %s308, 16 [#allocation2]
        %529 = vst.msk [vmem:[%s528] sm:$0xff] %vm379, %v526
        %s530 = scalar_lea.vmem %s321, 96
        %v531 = vld [vmem:[%s530] sm:$0xff]
        %v532 = vld [vmem:[%s530 + $0x8] sm:$0xff]
        %v533 = vld [vmem:[%s530 + $0x10] sm:$0xff]
        %v534 = vld [vmem:[%s530 + $0x18] sm:$0xff]
        %s535 = scalar_lea.vmem %s326, 3
        %v536 = vld [vmem:[%s535] sm:$0x1]
        %v538 = vperm.slane %v536, 0
        %540 = vmatpush.msra.mxu0 0.0
        %541 = vmatpush.msra.mxu0 0.0
        %542 = vmatpush.msra.mxu0 0.0
        %543 = vmatpush.msra.mxu0 0.0
        %544 = vmatpush.msra.mxu0 0.0
        %545 = vmatpush.msra.mxu0 0.0
        %546 = vmatpush.msra.mxu0 0.0
        %547 = vmatpush.msra.mxu0 0.0
        %548 = vmatpush.msra.mxu0 0.0
        %549 = vmatpush.msra.mxu0 0.0
        %550 = vmatpush.msra.mxu0 0.0
        %551 = vmatpush.msra.mxu0 0.0
        %552 = vmatpush.msra.mxu0 %v534
        %553 = vmatpush.msra.mxu0 %v533
        %554 = vmatpush.msra.mxu0 %v532
        %555 = vmatpush.msra.mxu0 %v531
        %556 = vmatmul.f32.gmra.mxu0 %v351
        %v557 = vpop.f32.mrf.mxu0
        %v558 = vadd.f32 %v538, %v557
        %559 = vdwg.mxu0
        %v560 = vmax.f32 %v558, 0.0
        %s561 = scalar_lea.vmem %s332, 24
        %v562 = vld [vmem:[%s561] sm:$0xff]
        %s563 = scalar_lea.vmem %s337, 3
        %v564 = vld [vmem:[%s563] sm:$0x1]
        %v566 = vperm.slane %v564, 0
        %v569 = vsel %vm379, %v560, 0
        %571 = vmatpush.msra.mxu0 0.0
        %572 = vmatpush.msra.mxu0 0.0
        %573 = vmatpush.msra.mxu0 0.0
        %574 = vmatpush.msra.mxu0 0.0
        %575 = vmatpush.msra.mxu0 0.0
        %576 = vmatpush.msra.mxu0 0.0
        %577 = vmatpush.msra.mxu0 0.0
        %578 = vmatpush.msra.mxu0 0.0
        %579 = vmatpush.msra.mxu0 0.0
        %580 = vmatpush.msra.mxu0 0.0
        %581 = vmatpush.msra.mxu0 0.0
        %582 = vmatpush.msra.mxu0 0.0
        %583 = vmatpush.msra.mxu0 0.0
        %584 = vmatpush.msra.mxu0 0.0
        %585 = vmatpush.msra.mxu0 0.0
        %586 = vmatpush.msra.mxu0 %v562
        %587 = vmatmul.f32.gmra.mxu0 %v569
        %v588 = vpop.f32.mrf.mxu0
        %v589 = vadd.f32 %v566, %v588
        %590 = vdwg.mxu0
        %s591 = scalar_lea.vmem %s308, 24 [#allocation2]
        %592 = vst.msk [vmem:[%s591] sm:$0xff] %vm379, %v589
        %s593 = sand.u32 %s182, 1
        %s594 = scalar_lea.sflag [#allocation3], %s593
        %s595 = sand.u32 %s182, 1
        %s596 = smul.addr %s595, 32
        %s597 = scalar_lea.vmem [#allocation2], %s596
        // Predicated region
        $region41: #{tpu_custom_call.1} parent=39 // pred_check
          %p598 = pneg %p192
        $region42: #{tpu_custom_call.1} parent=39 // pred_check_branch
          %600 = sbr.rel (%p598) target = $region44
        $region43: #{tpu_custom_call.1} parent=39 // pred_region
          %s601 = smul.u32 4, %s24
          %603 = vsyncadd %s594, 0
          %s604 = sadd.s32 %s26, %s601
          %s605 = smul.addr %s25, 4
          %s606 = sadd.s32 %s604, %s605
          %s607 = smul.addr %s606, 8
          %s608 = scalar_lea.hbm %s5, %s607
          %s609 = sshll.u32 %s597, 4
          %s610 = int_to_ptr.vmem [resolvable:$true] %s609
          %s611 = sshll.u32 %s608, 4
          %s612 = int_to_ptr.hbm [resolvable:$true] %s611
          %617 = dma.vmem_to_hbm [thread:$0]  %s610, 512, %s612, %s594, 128, 128, 8
        $region44: #{tpu_custom_call.1} parent=39 // pred_fallthru
          _
      $region40: #{tpu_custom_call.1} parent=5 // pred_fallthru
        _
      %p618 = scmp.le.s32.totalorder 2, %s14
      // Predicated region
      $region45: #{tpu_custom_call.1} parent=5 // pred_check
        %p619 = pneg %p618
      $region46: #{tpu_custom_call.1} parent=5 // pred_check_branch
        %621 = sbr.rel (%p619) target = $region48
      $region47: #{tpu_custom_call.1} parent=5 // pred_region
        %s622 = ssub.s32 %s14, 2
        // Predicated region
        $region49: #{tpu_custom_call.1} parent=47 // pred_check
          %p623 = pneg %p198
        $region50: #{tpu_custom_call.1} parent=47 // pred_check_branch
          %625 = sbr.rel (%p623) target = $region52
        $region51: #{tpu_custom_call.1} parent=47 // pred_region
          %s626 = sand.u32 %s183, 1
          %s627 = scalar_lea.sflag [#allocation3], %s626
          %s628 = sand.u32 %s183, 1
          %s629 = smul.addr %s628, 32
          %s630 = scalar_lea.vmem [#allocation2], %s629
          %632 = dma.done %s627, 512
        $region52: #{tpu_custom_call.1} parent=47 // pred_fallthru
          _
      $region48: #{tpu_custom_call.1} parent=5 // pred_fallthru
        _
    $region6: #{tpu_custom_call.1} parent=1 // loop_footer
      %s18 = sadd.s32 1, %s14
    $region7: #{tpu_custom_call.1} parent=1 // loop_footer_branch
      %13 = sbr.rel target = $region3
    $region8: #{tpu_custom_call.1} parent=1 // loop_exit
      _
    %633 = vsyncpa [#allocation3], 1
    %s634 = scalar_lea.sflag [#allocation3], 1
    %635 = vsyncpa %s634, 1

</llo_original>
